<compile_context>
chip_gen: v7x
topology: tpu7x:2x2x1
jax: 0.10.0
libtpu: 0.0.40
codegen_flags: <defaults>
</compile_context>

<pallas_src>
import functools

import jax
import jax.numpy as jnp
from jax import lax
from jax.experimental import pallas as pl
from jax.experimental.pallas import tpu as pltpu


def _pair_l1_sum(p, r, lane_valid):
    """sum |pad(p) - pad(r)| for one tile, where the SHORTER of p/r is
    right-padded with -1 along the sequence (sublane) axis.

    p, r: f32 (S_p, TB) / (S_r, TB) vreg values (sequence on sublanes, batch
    on lanes).  Shapes are static, so the overlap/tail split resolves at
    trace time.  lane_valid: optional (1, TB) bool mask for a partial last
    batch tile (None when the tile is full).
    """
    # |a - b| is symmetric: arrange p = longer (or equal), r = shorter.
    if p.shape[0] < r.shape[0]:
        p, r = r, p
    sp, sr = p.shape[0], r.shape[0]
    tb = p.shape[1]

    # Overlap region: zero-offset static slice of the longer array only.
    d = jnp.abs(p[:sr, :] - r)
    if lane_valid is not None:
        d = jnp.where(lane_valid, d, 0.0)
    s = jnp.sum(d)

    if sp > sr:
        # Tail rows of the longer array compare against the -1 padding of the
        # shorter one: |x - (-1)| = |x + 1|.  Full-width mask-and-select — no
        # unaligned sublane slice, single fused VPU + reduce chain.
        rows = lax.broadcasted_iota(jnp.int32, (sp, tb), 0)
        tail_mask = rows >= sr
        if lane_valid is not None:
            tail_mask = jnp.logical_and(tail_mask, lane_valid)
        s = s + jnp.sum(jnp.where(tail_mask, jnp.abs(p + 1.0), 0.0))
    return s


def _loss_kernel(cp_ref, cr_ref, up_ref, ur_ref, out_ref, *,
                 batch, tile_b, inv_c, inv_u, needs_mask):
    i = pl.program_id(0)

    @pl.when(i == 0)
    def _init():
        out_ref[0, 0] = 0.0

    if needs_mask:
        # Lane-validity mask for the (possibly partial) last batch tile:
        # out-of-bounds lanes of the block contain unspecified data.
        lane = lax.broadcasted_iota(jnp.int32, (1, tile_b), 1) + i * tile_b
        lane_valid = lane < batch
    else:
        lane_valid = None

    # Cast in-kernel: DMAs stay at native input width; cast rides idle VPU slots.
    cp = cp_ref[...].astype(jnp.float32)
    cr = cr_ref[...].astype(jnp.float32)
    up = up_ref[...].astype(jnp.float32)
    ur = ur_ref[...].astype(jnp.float32)

    partial = (_pair_l1_sum(cp, cr, lane_valid) * inv_c +
               _pair_l1_sum(up, ur, lane_valid) * inv_u)
    out_ref[0, 0] += partial


def parser_loss_sumtf(d_pred, c_pred, u_pred, d_real, c_real, u_real,
                      length_batch=None, *, tile_b=None):
    """JAX/Pallas equivalent of ParserLossSumTF.forward.

    d_pred / d_real / length_batch are kept for signature parity only; the
    reference forward never uses them (loss = loss_c + loss_u).
    """
    del d_pred, d_real, length_batch  # unused by the reference forward

    b = c_pred.shape[0]
    lc = max(c_pred.shape[1], c_real.shape[1])   # padded (max) lengths
    lu = max(u_pred.shape[1], u_real.shape[1])   #   -> mean denominators
    if b == 0 or lc == 0 or lu == 0:
        raise ValueError("ParserLossSumTF: empty batch / zero-length pair "
                         "would divide by zero in the mean.")

    # Lane-dense layout: batch (the growing axis) maps to the 128-lane axis.
    # With allow_input_fusion XLA may fuse these transposes / the upstream
    # producers directly into the pallas_call inputs.
    cp = jnp.transpose(c_pred)   # (S_cp, B)
    cr = jnp.transpose(c_real)   # (S_cr, B)
    up = jnp.transpose(u_pred)   # (S_up, B)
    ur = jnp.transpose(u_real)   # (S_ur, B)
    ins = (cp, cr, up, ur)

    # Batch tile: largest lane tile (multiple of 128, capped) such that the
    # double-buffered input blocks stay within ~16 MiB -> safe on v7x's
    # 32 MiB scoped / 64 MiB physical VMEM as well as v5e/v6e.
    per_lane_bytes = sum(int(x.shape[0]) * x.dtype.itemsize for x in ins)
    if tile_b is None:
        budget = 16 << 20
        tb = budget // max(1, 2 * per_lane_bytes)
        tb = max(128, min(1024, (tb // 128) * 128))
        tile_b = b if b <= tb else tb
    tile_b = int(tile_b)
    n_tiles = pl.cdiv(b, tile_b)
    needs_mask = (b % tile_b) != 0

    inv_c = 1.0 / float(b * lc)
    inv_u = 1.0 / float(b * lu)

    kernel = functools.partial(_loss_kernel, batch=b, tile_b=tile_b,
                               inv_c=inv_c, inv_u=inv_u, needs_mask=needs_mask)

    n_elems = b * lc + b * lu
    bytes_in = sum(int(x.size) * x.dtype.itemsize for x in ins)
    vmem_limit = int(min(60 << 20,
                         max(24 << 20, 2 * per_lane_bytes * tile_b + (4 << 20))))

    in_specs = [pl.BlockSpec((int(x.shape[0]), tile_b), lambda i: (0, i))
                for x in ins]

    out = pl.pallas_call(
        kernel,
        out_shape=jax.ShapeDtypeStruct((1, 1), jnp.float32),
        grid_spec=pltpu.PrefetchScalarGridSpec(
            num_scalar_prefetch=0,
            grid=(n_tiles,),
            in_specs=in_specs,
            # Scalar SMEM accumulator output, resident across the whole grid.
            out_specs=pl.BlockSpec((1, 1), lambda i: (0, 0),
                                   memory_space=pltpu.MemorySpace.SMEM),
        ),
        compiler_params=pltpu.CompilerParams(
            dimension_semantics=("arbitrary",),
            vmem_limit_bytes=vmem_limit,
            allow_input_fusion=[True, True, True, True],
        ),
        cost_estimate=pl.CostEstimate(
            flops=4 * n_elems,          # sub + abs + scale + accumulate (rough)
            transcendentals=0,
            bytes_accessed=bytes_in + 4),
    )(cp, cr, up, ur)
    return out[0, 0]


def _reference_loss(d_pred, c_pred, u_pred, d_real, c_real, u_real,
                    length_batch=None):
    """Pure-JAX mirror of the PyTorch forward (for a correctness check)."""
    def pad_pair(p, r):
        if p.shape[1] != r.shape[1]:
            diff = abs(p.shape[1] - r.shape[1])
            if r.shape[1] > p.shape[1]:
                p = jnp.pad(p, ((0, 0), (0, diff)), constant_values=-1.0)
            else:
                r = jnp.pad(r, ((0, 0), (0, diff)), constant_values=-1.0)
        return p, r

    cp, cr = pad_pair(c_pred, c_real)
    up, ur = pad_pair(u_pred, u_real)
    return jnp.mean(jnp.abs(cp - cr)) + jnp.mean(jnp.abs(up - ur))


if __name__ == "__main__":
    key = jax.random.PRNGKey(0)
    k = jax.random.split(key, 6)

    B = 2
    # c: prediction longer than ground truth (real gets -1 padded)
    # u: ground truth longer than prediction (pred gets -1 padded)
    d_pred = jax.random.normal(k[0], (B, 16), dtype=jnp.float32)  # unused by loss
    c_pred = jax.random.normal(k[1], (B, 16), dtype=jnp.float32)
    u_pred = jax.random.normal(k[2], (B, 10), dtype=jnp.float32)
    d_real = jax.random.normal(k[3], (B, 12), dtype=jnp.float32)  # unused by loss
    c_real = jax.random.normal(k[4], (B, 12), dtype=jnp.float32)
    u_real = jax.random.normal(k[5], (B, 14), dtype=jnp.float32)
    length_batch = jnp.full((B,), 12, dtype=jnp.int32)            # unused, parity only

    loss = jax.block_until_ready(
        parser_loss_sumtf(d_pred, c_pred, u_pred,
                          d_real, c_real, u_real, length_batch))
    ref = jax.block_until_ready(
        _reference_loss(d_pred, c_pred, u_pred, d_real, c_real, u_real))
    assert jnp.allclose(loss, ref, rtol=1e-5, atol=1e-5), (loss, ref)

    # Equal-length case (no padding branch).
    c_real_eq = jax.random.normal(k[4], (B, 16), dtype=jnp.float32)
    u_real_eq = jax.random.normal(k[5], (B, 10), dtype=jnp.float32)
    loss_eq = jax.block_until_ready(
        parser_loss_sumtf(d_pred, c_pred, u_pred,
                          d_real, c_real_eq, u_real_eq, length_batch))
    ref_eq = jax.block_until_ready(
        _reference_loss(d_pred, c_pred, u_pred, d_real, c_real_eq, u_real_eq))
    assert jnp.allclose(loss_eq, ref_eq, rtol=1e-5, atol=1e-5), (loss_eq, ref_eq)

    # Multi-tile grid with a masked partial last batch tile (B=160, TB=128).
    B2 = 160
    k2 = jax.random.split(jax.random.PRNGKey(0), 4)
    c_pred2 = jax.random.normal(k2[0], (B2, 16), dtype=jnp.float32)
    c_real2 = jax.random.normal(k2[1], (B2, 12), dtype=jnp.float32)
    u_pred2 = jax.random.normal(k2[2], (B2, 10), dtype=jnp.float32)
    u_real2 = jax.random.normal(k2[3], (B2, 14), dtype=jnp.float32)
    loss2 = jax.block_until_ready(
        parser_loss_sumtf(c_pred2, c_pred2, u_pred2,          # d args unused
                          c_real2, c_real2, u_real2, None, tile_b=128))
    ref2 = jax.block_until_ready(
        _reference_loss(None, c_pred2, u_pred2, None, c_real2, u_real2))
    assert jnp.allclose(loss2, ref2, rtol=1e-5, atol=1e-5), (loss2, ref2)

    print("KERNEL_OK")
</pallas_src>

<mosaic_0001>
module attributes {stable_mosaic.version = 11 : i64} {
  func.func @_loss_kernel(%arg0: i32, %arg1: memref<16x2xf32, #tpu.memory_space<vmem>>, %arg2: memref<12x2xf32, #tpu.memory_space<vmem>>, %arg3: memref<10x2xf32, #tpu.memory_space<vmem>>, %arg4: memref<14x2xf32, #tpu.memory_space<vmem>>, %arg5: memref<1x1xf32, #tpu.memory_space<smem>>) attributes {dimension_semantics = [#tpu.dimension_semantics<arbitrary>], iteration_bounds = array<i64: 1>, scalar_prefetch = 0 : i64, scratch_operands = 0 : i64, tpu.core_type = #tpu.core_type<tc>, window_params = [{transform_indices = @transform_0, window_bounds = array<i64: 16, 2>}, {transform_indices = @transform_1, window_bounds = array<i64: 12, 2>}, {transform_indices = @transform_2, window_bounds = array<i64: 10, 2>}, {transform_indices = @transform_3, window_bounds = array<i64: 14, 2>}, {transform_indices = @transform_4, window_bounds = array<i64: 1, 1>}]} {
    %c0_i32 = arith.constant 0 : i32
    %0 = arith.cmpi eq, %arg0, %c0_i32 : i32
    %1 = arith.extui %0 : i1 to i32
    %c0_i32_0 = arith.constant 0 : i32
    %2 = arith.cmpi ne, %1, %c0_i32_0 : i32
    scf.if %2 {
      %cst_21 = arith.constant 0.000000e+00 : f32
      %c0_22 = arith.constant 0 : index
      %c0_23 = arith.constant 0 : index
      %53 = memref.load %arg5[%c0_22, %c0_23] : memref<1x1xf32, #tpu.memory_space<smem>>
      memref.store %cst_21, %arg5[%c0_22, %c0_23] : memref<1x1xf32, #tpu.memory_space<smem>>
    } else {
    }
    %c0 = arith.constant 0 : index
    %c0_1 = arith.constant 0 : index
    %3 = vector.load %arg1[%c0, %c0_1] : memref<16x2xf32, #tpu.memory_space<vmem>>, vector<16x2xf32>
    %c0_2 = arith.constant 0 : index
    %c0_3 = arith.constant 0 : index
    %4 = vector.load %arg2[%c0_2, %c0_3] : memref<12x2xf32, #tpu.memory_space<vmem>>, vector<12x2xf32>
    %c0_4 = arith.constant 0 : index
    %c0_5 = arith.constant 0 : index
    %5 = vector.load %arg3[%c0_4, %c0_5] : memref<10x2xf32, #tpu.memory_space<vmem>>, vector<10x2xf32>
    %c0_6 = arith.constant 0 : index
    %c0_7 = arith.constant 0 : index
    %6 = vector.load %arg4[%c0_6, %c0_7] : memref<14x2xf32, #tpu.memory_space<vmem>>, vector<14x2xf32>
    %7 = vector.extract_strided_slice %3 {offsets = [0, 0], sizes = [12, 2], strides = [1, 1]} : vector<16x2xf32> to vector<12x2xf32>
    %8 = arith.subf %7, %4 : vector<12x2xf32>
    %9 = math.absf %8 : vector<12x2xf32>
    %10 = vector.shape_cast %9 : vector<12x2xf32> to vector<1x12x2xf32>
    %cst = arith.constant dense<0.000000e+00> : vector<1xf32>
    %11 = vector.multi_reduction <add>, %10, %cst [1, 2] : vector<1x12x2xf32> to vector<1xf32>
    %12 = vector.shape_cast %11 : vector<1xf32> to vector<1x1x1xf32>
    %13 = vector.extract %12[0, 0, 0] : f32 from vector<1x1x1xf32>
    %14 = tpu.iota {dimensions = array<i32: 0>} : vector<16x2xi32>
    %c12_i32 = arith.constant 12 : i32
    %15 = vector.broadcast %c12_i32 : i32 to vector<16x2xi32>
    %16 = arith.cmpi sge, %14, %15 : vector<16x2xi32>
    %cst_8 = arith.constant 1.000000e+00 : f32
    %17 = vector.broadcast %cst_8 : f32 to vector<16x2xf32>
    %18 = arith.addf %3, %17 : vector<16x2xf32>
    %19 = math.absf %18 : vector<16x2xf32>
    %cst_9 = arith.constant 0.000000e+00 : f32
    %20 = vector.broadcast %cst_9 : f32 to vector<16x2xf32>
    %21 = arith.select %16, %19, %20 : vector<16x2xi1>, vector<16x2xf32>
    %22 = vector.shape_cast %21 : vector<16x2xf32> to vector<1x16x2xf32>
    %cst_10 = arith.constant dense<0.000000e+00> : vector<1xf32>
    %23 = vector.multi_reduction <add>, %22, %cst_10 [1, 2] : vector<1x16x2xf32> to vector<1xf32>
    %24 = vector.shape_cast %23 : vector<1xf32> to vector<1x1x1xf32>
    %25 = vector.extract %24[0, 0, 0] : f32 from vector<1x1x1xf32>
    %26 = arith.addf %13, %25 : f32
    %cst_11 = arith.constant 3.125000e-02 : f32
    %27 = arith.mulf %26, %cst_11 : f32
    %28 = vector.extract_strided_slice %6 {offsets = [0, 0], sizes = [10, 2], strides = [1, 1]} : vector<14x2xf32> to vector<10x2xf32>
    %29 = arith.subf %28, %5 : vector<10x2xf32>
    %30 = math.absf %29 : vector<10x2xf32>
    %31 = vector.shape_cast %30 : vector<10x2xf32> to vector<1x10x2xf32>
    %cst_12 = arith.constant dense<0.000000e+00> : vector<1xf32>
    %32 = vector.multi_reduction <add>, %31, %cst_12 [1, 2] : vector<1x10x2xf32> to vector<1xf32>
    %33 = vector.shape_cast %32 : vector<1xf32> to vector<1x1x1xf32>
    %34 = vector.extract %33[0, 0, 0] : f32 from vector<1x1x1xf32>
    %35 = tpu.iota {dimensions = array<i32: 0>} : vector<14x2xi32>
    %c10_i32 = arith.constant 10 : i32
    %36 = vector.broadcast %c10_i32 : i32 to vector<14x2xi32>
    %37 = arith.cmpi sge, %35, %36 : vector<14x2xi32>
    %cst_13 = arith.constant 1.000000e+00 : f32
    %38 = vector.broadcast %cst_13 : f32 to vector<14x2xf32>
    %39 = arith.addf %6, %38 : vector<14x2xf32>
    %40 = math.absf %39 : vector<14x2xf32>
    %cst_14 = arith.constant 0.000000e+00 : f32
    %41 = vector.broadcast %cst_14 : f32 to vector<14x2xf32>
    %42 = arith.select %37, %40, %41 : vector<14x2xi1>, vector<14x2xf32>
    %43 = vector.shape_cast %42 : vector<14x2xf32> to vector<1x14x2xf32>
    %cst_15 = arith.constant dense<0.000000e+00> : vector<1xf32>
    %44 = vector.multi_reduction <add>, %43, %cst_15 [1, 2] : vector<1x14x2xf32> to vector<1xf32>
    %45 = vector.shape_cast %44 : vector<1xf32> to vector<1x1x1xf32>
    %46 = vector.extract %45[0, 0, 0] : f32 from vector<1x1x1xf32>
    %47 = arith.addf %34, %46 : f32
    %cst_16 = arith.constant 0.0357142873 : f32
    %48 = arith.mulf %47, %cst_16 : f32
    %49 = arith.addf %27, %48 : f32
    %c0_17 = arith.constant 0 : index
    %c0_18 = arith.constant 0 : index
    %50 = memref.load %arg5[%c0_17, %c0_18] : memref<1x1xf32, #tpu.memory_space<smem>>
    %51 = arith.addf %50, %49 : f32
    %c0_19 = arith.constant 0 : index
    %c0_20 = arith.constant 0 : index
    %52 = memref.load %arg5[%c0_19, %c0_20] : memref<1x1xf32, #tpu.memory_space<smem>>
    memref.store %51, %arg5[%c0_19, %c0_20] : memref<1x1xf32, #tpu.memory_space<smem>>
    return
  }
  func.func @transform_0(%arg0: i32) -> (i32, i32) {
    %c0_i32 = arith.constant 0 : i32
    %c0_i32_0 = arith.constant 0 : i32
    return %c0_i32, %arg0 : i32, i32
  }
  func.func @transform_1(%arg0: i32) -> (i32, i32) {
    %c0_i32 = arith.constant 0 : i32
    %c0_i32_0 = arith.constant 0 : i32
    return %c0_i32, %arg0 : i32, i32
  }
  func.func @transform_2(%arg0: i32) -> (i32, i32) {
    %c0_i32 = arith.constant 0 : i32
    %c0_i32_0 = arith.constant 0 : i32
    return %c0_i32, %arg0 : i32, i32
  }
  func.func @transform_3(%arg0: i32) -> (i32, i32) {
    %c0_i32 = arith.constant 0 : i32
    %c0_i32_0 = arith.constant 0 : i32
    return %c0_i32, %arg0 : i32, i32
  }
  func.func @transform_4(%arg0: i32) -> (i32, i32) {
    %c0_i32 = arith.constant 0 : i32
    %c0_i32_0 = arith.constant 0 : i32
    %c0_i32_1 = arith.constant 0 : i32
    return %c0_i32, %c0_i32_0 : i32, i32
  }
}

</mosaic_0001>

<llo_original>
// kernel: tpu_custom_call.1
$region0: #{tpu_custom_call.1}
  #allocation0 [shape = 'u32[]', space=smem, size = 0x4, offset = 0x4, fixed_abs, tag = 'smem constant byte address 0x4 - core index']
  #allocation1 [shape = 'u32[144,128]{1,0:T(1,128)}', space=vmem, size = 0x12000, scoped, tag = 'internal scratch']
  %s0 = inlined_call_operand.vmem [shape: f32[16,2], index: 0, kind: input, shape index: {}]
  %s1 = inlined_call_operand.vmem [shape: f32[12,2], index: 1, kind: input, shape index: {}]
  %s2 = inlined_call_operand.vmem [shape: f32[10,2], index: 2, kind: input, shape index: {}]
  %s3 = inlined_call_operand.vmem [shape: f32[14,2], index: 3, kind: input, shape index: {}]
  %s4 = inlined_call_operand.hbm [shape: f32[1,1], index: 4, kind: output, shape index: {}]
  %s5 = sld [smem:[#allocation0]]
  $region30: #{tpu_custom_call.1} parent=0
    _
  %s7 = ssub.s32 1, %s5
  %s8 = scalar_select 0, %s7, %s5
  $region1: #{tpu_custom_call.1} parent=0
    #allocation2 [shape = 'u8[512]{0}', space=smem, size = 0x200, scoped, tag = 'output window, operand 0, single buffered']
    #allocation3 [shape = 's32[1]{0}', space=sflag, size = 0x4, scoped, tag = 'scoped memory for tpu_custom_call.1']
    %9 = vsyncpa [#allocation3], 0
    // Predicated region
    $region2: #{tpu_custom_call.1} parent=1 // pred_check
      _
    $region3: #{tpu_custom_call.1} parent=1 // pred_check_branch
      %11 = sbr.rel (0) target = $region5
    $region4: #{tpu_custom_call.1} parent=1 // pred_region
      _
    $region5: #{tpu_custom_call.1} parent=1 // pred_fallthru
      _
    // Predicated region
    $region6: #{tpu_custom_call.1} parent=1 // pred_check
      _
    $region7: #{tpu_custom_call.1} parent=1 // pred_check_branch
      %13 = sbr.rel (0) target = $region9
    $region8: #{tpu_custom_call.1} parent=1 // pred_region
      _
    $region9: #{tpu_custom_call.1} parent=1 // pred_fallthru
      _
    // Predicated region
    $region10: #{tpu_custom_call.1} parent=1 // pred_check
      _
    $region11: #{tpu_custom_call.1} parent=1 // pred_check_branch
      %15 = sbr.rel (0) target = $region13
    $region12: #{tpu_custom_call.1} parent=1 // pred_region
      _
    $region13: #{tpu_custom_call.1} parent=1 // pred_fallthru
      _
    // Predicated region
    $region14: #{tpu_custom_call.1} parent=1 // pred_check
      _
    $region15: #{tpu_custom_call.1} parent=1 // pred_check_branch
      %17 = sbr.rel (0) target = $region17
    $region16: #{tpu_custom_call.1} parent=1 // pred_region
      _
    $region17: #{tpu_custom_call.1} parent=1 // pred_fallthru
      _
    %p18 = scmp.eq.s32.totalorder 0, 0
    // Predicated region
    $region18: #{tpu_custom_call.1} parent=1 // pred_check
      %p19 = pneg %p18
    $region19: #{tpu_custom_call.1} parent=1 // pred_check_branch
      %21 = sbr.rel (%p19) target = $region21
    $region20: #{tpu_custom_call.1} parent=1 // pred_region
      %s22 = scalar_lea.smem [#allocation2], 0
      %23 = sst [smem:[%s22]] 0.0
    $region21: #{tpu_custom_call.1} parent=1 // pred_fallthru
      _
    %v24 = vld [vmem:[%s0] sm:$0xff]
    %v25 = vld [vmem:[%s0 + $0x8] sm:$0xff]
    %v26 = vld [vmem:[%s1] sm:$0xff]
    %v27 = vld [vmem:[%s1 + $0x8] sm:$0xf]
    %v28 = vld [vmem:[%s2] sm:$0xff]
    %v29 = vld [vmem:[%s2 + $0x8] sm:$0x3]
    %v30 = vld [vmem:[%s3] sm:$0xff]
    %v31 = vld [vmem:[%s3 + $0x8] sm:$0x3f]
    %v32 = vsub.f32 %v24, %v26
    %v33 = vsub.f32 %v25, %v27
    %v34 = vand.u32 2147483647, %v32
    %v35 = vand.u32 2147483647, %v33
    %vm36 = vcmask 15360
    %v37 = vsel %vm36, %v34, 0.0
    %vm38 = vcmask 11264
    %v39 = vsel %vm38, %v35, 0.0
    %v40 = vadd.f32 %v37, %v39
    %41 = vadd.xlane.f32.xlu0 %v40
    %v42 = vpop.xlane.xlu0 %41
    %v43 = vrot.slane %v42, 4
    %v44 = vadd.f32 %v42, %v43
    %v45 = vrot.slane %v44, 2
    %v46 = vadd.f32 %v44, %v45
    %v47 = vrot.slane %v46, 1
    %v48 = vadd.f32 %v46, %v47
    %s49 = vtos %v48
    %v50 = vlaneseq
    %v51 = vshrl.u32 %v50, 7
    %v52 = vadd.s32 %v51, 8
    %vm53 = vcmp.ge.s32.totalorder %v51, 12
    %vm54 = vcmp.ge.s32.totalorder %v52, 12
    %v55 = vadd.f32 %v24, 1.0
    %v56 = vadd.f32 %v25, 1.0
    %v57 = vand.u32 2147483647, %v55
    %v58 = vand.u32 2147483647, %v56
    %v59 = vsel %vm53, %v57, 0.0
    %v60 = vsel %vm54, %v58, 0.0
    %v61 = vsel %vm36, %v59, 0.0
    %v62 = vsel %vm36, %v60, 0.0
    %v63 = vadd.f32 %v61, %v62
    %64 = vadd.xlane.f32.xlu0 %v63
    %v65 = vpop.xlane.xlu0 %64
    %v66 = vrot.slane %v65, 4
    %v67 = vadd.f32 %v65, %v66
    %v68 = vrot.slane %v67, 2
    %v69 = vadd.f32 %v67, %v68
    %v70 = vrot.slane %v69, 1
    %v71 = vadd.f32 %v69, %v70
    %s72 = vtos %v71
    %s73 = sadd.f32 %s49, %s72
    %s74 = smul.f32 %s73, 0.03125
    %v75 = vsub.f32 %v30, %v28
    %v76 = vsub.f32 %v31, %v29
    %v77 = vand.u32 2147483647, %v75
    %v78 = vand.u32 2147483647, %v76
    %v79 = vsel %vm36, %v77, 0.0
    %vm80 = vcmask 9216
    %v81 = vsel %vm80, %v78, 0.0
    %v82 = vadd.f32 %v79, %v81
    %83 = vadd.xlane.f32.xlu0 %v82
    %v84 = vpop.xlane.xlu0 %83
    %v85 = vrot.slane %v84, 4
    %v86 = vadd.f32 %v84, %v85
    %v87 = vrot.slane %v86, 2
    %v88 = vadd.f32 %v86, %v87
    %v89 = vrot.slane %v88, 1
    %v90 = vadd.f32 %v88, %v89
    %s91 = vtos %v90
    %vm92 = vcmp.ge.s32.totalorder %v51, 10
    %vm93 = vcmp.ge.s32.totalorder %v52, 10
    %v94 = vadd.f32 %v30, 1.0
    %v95 = vadd.f32 %v31, 1.0
    %v96 = vand.u32 2147483647, %v94
    %v97 = vand.u32 2147483647, %v95
    %v98 = vsel %vm92, %v96, 0.0
    %v99 = vsel %vm93, %v97, 0.0
    %v100 = vsel %vm36, %v98, 0.0
    %vm101 = vcmask 13312
    %v102 = vsel %vm101, %v99, 0.0
    %v103 = vadd.f32 %v100, %v102
    %104 = vadd.xlane.f32.xlu0 %v103
    %v105 = vpop.xlane.xlu0 %104
    %v106 = vrot.slane %v105, 4
    %v107 = vadd.f32 %v105, %v106
    %v108 = vrot.slane %v107, 2
    %v109 = vadd.f32 %v107, %v108
    %v110 = vrot.slane %v109, 1
    %v111 = vadd.f32 %v109, %v110
    %s112 = vtos %v111
    %s113 = sadd.f32 %s91, %s112
    %s114 = smul.f32 %s113, 0.035714287
    %s115 = sadd.f32 %s74, %s114
    %s116 = sld [smem:[#allocation2]]
    %s117 = sadd.f32 %s116, %s115
    %s118 = scalar_lea.smem [#allocation2], 0
    %119 = sst [smem:[%s118]] %s117
    // Predicated region
    $region22: #{tpu_custom_call.1} parent=1 // pred_check
      _
    $region23: #{tpu_custom_call.1} parent=1 // pred_check_branch
      %121 = sbr.rel (0) target = $region25
    $region24: #{tpu_custom_call.1} parent=1 // pred_region
      %s123 = ssub.s32 16, 16
      %124 = vsyncadd [#allocation3], %s123
      %127 = dma.smem_to_hbm [#allocation2], 16, %s4, [#allocation3]
    $region25: #{tpu_custom_call.1} parent=1 // pred_fallthru
      _
    // Predicated region
    $region26: #{tpu_custom_call.1} parent=1 // pred_check
      _
    $region27: #{tpu_custom_call.1} parent=1 // pred_check_branch
      %129 = sbr.rel (0) target = $region29
    $region28: #{tpu_custom_call.1} parent=1 // pred_region
      %130 = dma.done [#allocation3], 16
    $region29: #{tpu_custom_call.1} parent=1 // pred_fallthru
      _
    %131 = sfence
    %132 = vsyncpa [#allocation3], 1

</llo_original>
